<compile_context>
chip_gen: v6e
topology: v6e:2x2x1
jax: 0.10.0
libtpu: 0.0.40
codegen_flags: <defaults>
</compile_context>

<pallas_src>
import math

import jax
import jax.numpy as jnp
from jax import lax
from jax.experimental import pallas as pl
from jax.experimental.pallas import tpu as pltpu


def _round_up(x, multiple):
    return ((x + multiple - 1) // multiple) * multiple


def _intermediate_kernel(x_ref, w_ref, b_ref, o_ref):
    # x_ref: (TM, dmodel) bf16   w_ref: (dmodel, TN) bf16
    # b_ref: (1, TN) f32         o_ref: (TM, TN) out dtype
    x = x_ref[...]
    w = w_ref[...]
    b = b_ref[...]

    # MXU matmul with f32 accumulation, bias add in f32.
    h = jnp.dot(x, w, preferred_element_type=jnp.float32) + b

    # Exact (erf-based) GELU, matching torch.nn.GELU default:
    #   gelu(x) = 0.5 * x * (1 + erf(x / sqrt(2)))
    g = 0.5 * h * (1.0 + lax.erf(h * (1.0 / math.sqrt(2.0))))

    o_ref[...] = g.astype(o_ref.dtype)


def attention_intermediate(hidden_states, weight, bias, *,
                           tm=512, tn=1024,
                           matmul_dtype=jnp.bfloat16):
    """Forward pass of AttentionIntermediate.

    hidden_states: [batch, seq, dmodel] float32
    weight:        [dmodel, dff]        float32 (transposed vs torch's [dff, dmodel])
    bias:          [dff]                float32
    returns:       [batch, seq, dff]    float32
    """
    batch, seq, dmodel = hidden_states.shape
    dff = weight.shape[1]
    m = batch * seq
    out_dtype = hidden_states.dtype

    # Adapt tile sizes to small problems while keeping (8, 128) alignment and
    # lane-dense output stores.
    tm = min(tm, _round_up(m, 8))
    tn = min(tn, _round_up(dff, 128))

    m_p = _round_up(m, tm)
    n_p = _round_up(dff, tn)

    x2d = hidden_states.reshape(m, dmodel).astype(matmul_dtype)
    w2d = weight.astype(matmul_dtype)
    b2d = bias.reshape(1, dff).astype(jnp.float32)

    # Zero-pad tail tiles (padded rows/cols are sliced away below).
    if m_p != m:
        x2d = jnp.pad(x2d, ((0, m_p - m), (0, 0)))
    if n_p != dff:
        w2d = jnp.pad(w2d, ((0, 0), (0, n_p - dff)))
        b2d = jnp.pad(b2d, ((0, 0), (0, n_p - dff)))

    # Grid: dff tiles outer, M tiles inner -> W/bias block index constant over
    # the inner loop (no redundant W re-fetch); x and out stream.
    grid = (n_p // tn, m_p // tm)

    cost = pl.CostEstimate(
        flops=2 * m_p * dmodel * n_p,
        transcendentals=m_p * n_p,
        bytes_accessed=(x2d.size * x2d.dtype.itemsize
                        + w2d.size * w2d.dtype.itemsize
                        + b2d.size * b2d.dtype.itemsize
                        + m_p * n_p * jnp.dtype(out_dtype).itemsize),
    )

    out2d = pl.pallas_call(
        _intermediate_kernel,
        out_shape=jax.ShapeDtypeStruct((m_p, n_p), out_dtype),
        grid_spec=pltpu.PrefetchScalarGridSpec(
            num_scalar_prefetch=0,
            grid=grid,
            in_specs=[
                pl.BlockSpec((tm, dmodel), lambda j, i: (i, 0)),   # x tile
                pl.BlockSpec((dmodel, tn), lambda j, i: (0, j)),   # W tile (resident across i)
                pl.BlockSpec((1, tn), lambda j, i: (0, j)),        # bias tile
            ],
            out_specs=pl.BlockSpec((tm, tn), lambda j, i: (i, j)),
        ),
        compiler_params=pltpu.CompilerParams(
            dimension_semantics=("parallel", "parallel"),
        ),
        cost_estimate=cost,
    )(x2d, w2d, b2d)

    return out2d[:m, :dff].reshape(batch, seq, dff)


if __name__ == "__main__":
    # Small, module-consistent shapes: batch=2, seq=8, dmodel=32, dff=64
    batch, seq, dmodel, dff = 2, 8, 32, 64

    key = jax.random.PRNGKey(0)
    k_x, k_w, k_b = jax.random.split(key, 3)

    # Deterministic parameter init (synthetic; mimics Linear(dmodel, dff)).
    bound = 1.0 / math.sqrt(dmodel)
    weight = jax.random.uniform(
        k_w, (dmodel, dff), jnp.float32, minval=-bound, maxval=bound
    )
    bias = jax.random.uniform(
        k_b, (dff,), jnp.float32, minval=-bound, maxval=bound
    )

    hidden_states = jax.random.normal(k_x, (batch, seq, dmodel), jnp.float32)

    out = attention_intermediate(hidden_states, weight, bias)
    out = jax.block_until_ready(out)

    # Reference with the same bf16 matmul inputs / f32 accumulation, f32 GELU.
    h_ref = jnp.dot(
        hidden_states.astype(jnp.bfloat16).reshape(-1, dmodel),
        weight.astype(jnp.bfloat16),
        preferred_element_type=jnp.float32,
    ).reshape(batch, seq, dff) + bias
    ref = 0.5 * h_ref * (1.0 + lax.erf(h_ref / math.sqrt(2.0)))

    assert out.shape == (batch, seq, dff)
    assert jnp.allclose(out, ref, atol=1e-3, rtol=1e-3)

    # Loose sanity check vs the pure-f32 torch semantics (bf16 MXU inputs
    # introduce ~1e-2 relative error; flagged to the model owner).
    h32 = hidden_states @ weight + bias
    ref32 = 0.5 * h32 * (1.0 + lax.erf(h32 / math.sqrt(2.0)))
    assert jnp.allclose(out, ref32, atol=5e-2, rtol=5e-2)

    print("KERNEL_OK")
</pallas_src>

<mosaic_0001>
module attributes {stable_mosaic.version = 11 : i64} {
  func.func @_intermediate_kernel(%arg0: i32, %arg1: i32, %arg2: memref<16x32xbf16, #tpu.memory_space<vmem>>, %arg3: memref<32x128xbf16, #tpu.memory_space<vmem>>, %arg4: memref<1x128xf32, #tpu.memory_space<vmem>>, %arg5: memref<16x128xf32, #tpu.memory_space<vmem>>) attributes {dimension_semantics = [#tpu.dimension_semantics<parallel>, #tpu.dimension_semantics<parallel>], iteration_bounds = array<i64: 1, 1>, scalar_prefetch = 0 : i64, scratch_operands = 0 : i64, tpu.core_type = #tpu.core_type<tc>, window_params = [{transform_indices = @transform_0, window_bounds = array<i64: 16, 32>}, {transform_indices = @transform_1, window_bounds = array<i64: 32, 128>}, {transform_indices = @transform_2, window_bounds = array<i64: 1, 128>}, {transform_indices = @transform_3, window_bounds = array<i64: 16, 128>}]} {
    %c0 = arith.constant 0 : index
    %c0_0 = arith.constant 0 : index
    %0 = vector.load %arg2[%c0, %c0_0] : memref<16x32xbf16, #tpu.memory_space<vmem>>, vector<16x32xbf16>
    %c0_1 = arith.constant 0 : index
    %c0_2 = arith.constant 0 : index
    %1 = vector.load %arg3[%c0_1, %c0_2] : memref<32x128xbf16, #tpu.memory_space<vmem>>, vector<32x128xbf16>
    %c0_3 = arith.constant 0 : index
    %c0_4 = arith.constant 0 : index
    %2 = vector.load %arg4[%c0_3, %c0_4] : memref<1x128xf32, #tpu.memory_space<vmem>>, vector<1x128xf32>
    %cst = arith.constant dense<0.000000e+00> : vector<16x128xf32>
    %3 = tpu.matmul %0, %1, %cst {dimension_numbers = #tpu.dot_dimension_numbers<[1], [0], [0], [1], [0, 0, 1, 1], [], []>} : vector<16x32xbf16>, vector<32x128xbf16>, vector<16x128xf32> -> vector<16x128xf32>
    %4 = vector.broadcast %2 : vector<1x128xf32> to vector<16x128xf32>
    %5 = arith.addf %3, %4 : vector<16x128xf32>
    %cst_5 = arith.constant 5.000000e-01 : f32
    %6 = vector.broadcast %cst_5 : f32 to vector<16x128xf32>
    %7 = arith.mulf %6, %5 : vector<16x128xf32>
    %cst_6 = arith.constant 0.707106769 : f32
    %8 = vector.broadcast %cst_6 : f32 to vector<16x128xf32>
    %9 = arith.mulf %5, %8 : vector<16x128xf32>
    %10 = math.erf %9 : vector<16x128xf32>
    %cst_7 = arith.constant 1.000000e+00 : f32
    %11 = vector.broadcast %cst_7 : f32 to vector<16x128xf32>
    %12 = arith.addf %11, %10 : vector<16x128xf32>
    %13 = arith.mulf %7, %12 : vector<16x128xf32>
    %c0_8 = arith.constant 0 : index
    %c0_9 = arith.constant 0 : index
    %14 = vector.load %arg5[%c0_8, %c0_9] : memref<16x128xf32, #tpu.memory_space<vmem>>, vector<16x128xf32>
    tpu.vector_store %arg5[%c0_8, %c0_9], %13 {strides = array<i32>} : memref<16x128xf32, #tpu.memory_space<vmem>>, vector<16x128xf32>,
    return
  }
  func.func @transform_0(%arg0: i32, %arg1: i32) -> (i32, i32) {
    %c0_i32 = arith.constant 0 : i32
    %c0_i32_0 = arith.constant 0 : i32
    return %arg1, %c0_i32 : i32, i32
  }
  func.func @transform_1(%arg0: i32, %arg1: i32) -> (i32, i32) {
    %c0_i32 = arith.constant 0 : i32
    %c0_i32_0 = arith.constant 0 : i32
    return %c0_i32, %arg0 : i32, i32
  }
  func.func @transform_2(%arg0: i32, %arg1: i32) -> (i32, i32) {
    %c0_i32 = arith.constant 0 : i32
    %c0_i32_0 = arith.constant 0 : i32
    return %c0_i32, %arg0 : i32, i32
  }
  func.func @transform_3(%arg0: i32, %arg1: i32) -> (i32, i32) {
    %c0_i32 = arith.constant 0 : i32
    return %arg1, %arg0 : i32, i32
  }
}

</mosaic_0001>

<llo_original>
// kernel: tpu_custom_call.1
$region0: #{tpu_custom_call.1}
  #allocation0 [shape = 'u32[]', space=smem, size = 0x4, offset = 0x4, fixed_abs, tag = 'smem constant byte address 0x4 - core index']
  #allocation1 [shape = 'u32[144,128]{1,0:T(1,128)}', space=vmem, size = 0x12000, scoped, tag = 'internal scratch']
  %s0 = inlined_call_operand.hbm [shape: bf16[16,32], index: 0, kind: input, shape index: {}]
  %s1 = inlined_call_operand.hbm [shape: bf16[32,128], index: 1, kind: input, shape index: {}]
  %s2 = inlined_call_operand.vmem [shape: f32[1,128], index: 2, kind: input, shape index: {}]
  %s3 = inlined_call_operand.hbm [shape: f32[16,128], index: 3, kind: output, shape index: {}]
  %s4 = sld [smem:[#allocation0]]
  $region30: #{tpu_custom_call.1} parent=0
    _
  %s6 = ssub.s32 1, %s4
  %s7 = scalar_select 0, %s6, %s4
  $region1: #{tpu_custom_call.1} parent=0
    #allocation2 [shape = 'u8[4096]{0}', space=vmem, size = 0x1000, scoped, tag = 'input window, operand 0, single buffered']
    #allocation3 [shape = 's32[1]{0}', space=sflag, size = 0x4, scoped, tag = 'scoped memory for tpu_custom_call.1']
    #allocation4 [shape = 's32[1]{0}', space=sflag, size = 0x4, scoped, tag = 'scoped memory for tpu_custom_call.1']
    #allocation5 [shape = 'u8[8192]{0}', space=vmem, size = 0x2000, scoped, tag = 'input window, operand 1, single buffered']
    #allocation6 [shape = 's32[1]{0}', space=sflag, size = 0x4, scoped, tag = 'scoped memory for tpu_custom_call.1']
    #allocation7 [shape = 'u8[8192]{0}', space=vmem, size = 0x2000, scoped, tag = 'output window, operand 0, single buffered']
    %8 = vsyncpa [#allocation3], 0
    %9 = vsyncpa [#allocation6], 0
    %10 = vsyncpa [#allocation4], 0
    // Predicated region
    $region2: #{tpu_custom_call.1} parent=1 // pred_check
      _
    $region3: #{tpu_custom_call.1} parent=1 // pred_check_branch
      %12 = sbr.rel (0) target = $region5
    $region4: #{tpu_custom_call.1} parent=1 // pred_region
      %s14 = ssub.s32 128, 128
      %15 = vsyncadd [#allocation3], %s14
      %s16 = sshll.u32 [#allocation2], 4
      %s17 = int_to_ptr.vmem [resolvable:$true] %s16
      %22 = dma.hbm_to_vmem [thread:$0]  %s0, 128, %s17, [#allocation3], 64, 64, 4
    $region5: #{tpu_custom_call.1} parent=1 // pred_fallthru
      _
    // Predicated region
    $region6: #{tpu_custom_call.1} parent=1 // pred_check
      _
    $region7: #{tpu_custom_call.1} parent=1 // pred_check_branch
      %24 = sbr.rel (0) target = $region9
    $region8: #{tpu_custom_call.1} parent=1 // pred_region
      %s26 = ssub.s32 256, 256
      %27 = vsyncadd [#allocation6], %s26
      %s28 = sshll.u32 [#allocation5], 4
      %s29 = int_to_ptr.vmem [resolvable:$true] %s28
      %34 = dma.hbm_to_vmem [thread:$0]  %s1, 256, %s29, [#allocation6], 64, 64, 4
    $region9: #{tpu_custom_call.1} parent=1 // pred_fallthru
      _
    // Predicated region
    $region10: #{tpu_custom_call.1} parent=1 // pred_check
      _
    $region11: #{tpu_custom_call.1} parent=1 // pred_check_branch
      %36 = sbr.rel (0) target = $region13
    $region12: #{tpu_custom_call.1} parent=1 // pred_region
      _
    $region13: #{tpu_custom_call.1} parent=1 // pred_fallthru
      _
    // Predicated region
    $region14: #{tpu_custom_call.1} parent=1 // pred_check
      _
    $region15: #{tpu_custom_call.1} parent=1 // pred_check_branch
      %38 = sbr.rel (0) target = $region17
    $region16: #{tpu_custom_call.1} parent=1 // pred_region
      %39 = dma.done [#allocation3], 128
    $region17: #{tpu_custom_call.1} parent=1 // pred_fallthru
      _
    // Predicated region
    $region18: #{tpu_custom_call.1} parent=1 // pred_check
      _
    $region19: #{tpu_custom_call.1} parent=1 // pred_check_branch
      %41 = sbr.rel (0) target = $region21
    $region20: #{tpu_custom_call.1} parent=1 // pred_region
      %42 = dma.done [#allocation6], 256
    $region21: #{tpu_custom_call.1} parent=1 // pred_fallthru
      _
    %v44 = vld [vmem:[#allocation2] sm:$0xf]
    %v45 = vld [vmem:[#allocation2 + $0x4] sm:$0xf]
    %v46 = vld [vmem:[#allocation5] sm:$0xf]
    %v47 = vld [vmem:[#allocation5 + $0x4] sm:$0xf]
    %v48 = vld [vmem:[#allocation5 + $0x8] sm:$0xf]
    %v49 = vld [vmem:[#allocation5 + $0xc] sm:$0xf]
    %v50 = vld [vmem:[%s2] sm:$0x1]
    %v52 = vlaneseq
    %v53 = vshrl.u32 %v52, 7
    %v54 = vsub.s32 0, %v53
    %v55 = vrot.slane %v50, %v54
    %v59 = vunpack.c.l.b16 %v44
    %v60 = vunpack.c.l.b16 %v45
    %v61 = vpack.c.b16 %v60, %v59
    %v66 = vunpack.c.l.b16 %v46
    %v67 = vunpack.c.l.b16 %v47
    %v68 = vunpack.c.l.b16 %v48
    %v69 = vunpack.c.l.b16 %v49
    %v70 = vpack.c.b16 %v67, %v66
    %v71 = vpack.c.b16 %v69, %v68
    %vm74 = vcmask 261120
    %v76 = vsel %vm74, %v61, 0
    %78 = vmatprep.subr.bf16.mxu0 0
    %79 = vmatpush1.bf16.msra.mxu0 0
    %80 = vmatprep.subr.bf16.mxu0 0
    %81 = vmatpush1.bf16.msra.mxu0 0
    %82 = vmatprep.subr.bf16.mxu0 0
    %83 = vmatpush1.bf16.msra.mxu0 0
    %84 = vmatprep.subr.bf16.mxu0 0
    %85 = vmatpush1.bf16.msra.mxu0 0
    %86 = vmatprep.subr.bf16.mxu0 0
    %87 = vmatpush1.bf16.msra.mxu0 0
    %88 = vmatprep.subr.bf16.mxu0 0
    %89 = vmatpush1.bf16.msra.mxu0 0
    %90 = vmatprep.subr.bf16.mxu0 0
    %91 = vmatpush1.bf16.msra.mxu0 %v71
    %92 = vmatprep.subr.bf16.mxu0 0
    %93 = vmatpush1.bf16.msra.mxu0 %v70
    %94 = vmatprep.subr.bf16.mxu0 0
    %95 = vmatpush2.bf16.msra.mxu0 0
    %96 = vmatprep.subr.bf16.mxu0 0
    %97 = vmatpush2.bf16.msra.mxu0 0
    %98 = vmatprep.subr.bf16.mxu0 0
    %99 = vmatpush2.bf16.msra.mxu0 0
    %100 = vmatprep.subr.bf16.mxu0 0
    %101 = vmatpush2.bf16.msra.mxu0 0
    %102 = vmatprep.subr.bf16.mxu0 0
    %103 = vmatpush2.bf16.msra.mxu0 0
    %104 = vmatprep.subr.bf16.mxu0 0
    %105 = vmatpush2.bf16.msra.mxu0 0
    %106 = vmatprep.subr.bf16.mxu0 0
    %107 = vmatpush2.bf16.msra.mxu0 0
    %108 = vmatprep.subr.bf16.mxu0 0
    %109 = vmatpush2.bf16.msra.mxu0 0
    %110 = vmatprep.mubr.bf16.mxu0 0
    %111 = vmatmul.mubr.bf16.gmra.mxu0 %v76
    %v112 = vpop.f32.mrf.mxu0
    %v113 = vadd.f32 %v55, %v112
    %v114 = vpop.f32.mrf.mxu0
    %v115 = vpop.f32.mrf.mxu0
    %v116 = vadd.f32 %v55, %v115
    %v117 = vpop.f32.mrf.mxu0
    %118 = vdwg.mxu0
    %v119 = vmul.f32 %v113, 0.5
    %v120 = vmul.f32 %v116, 0.5
    %v121 = vmul.f32 %v113, 0.70710677
    %v122 = vmul.f32 %v116, 0.70710677
    %v123 = verf.f32.pop %v121
    %v124 = verf.f32.pop %v122
    %v125 = vadd.f32 %v123, 1.0
    %v126 = vadd.f32 %v124, 1.0
    %v127 = vmul.f32 %v119, %v125
    %v128 = vmul.f32 %v120, %v126
    %129 = vst [vmem:[#allocation7] sm:$0xff] %v127
    %130 = vst [vmem:[#allocation7 + $0x8] sm:$0xff] %v128
    // Predicated region
    $region22: #{tpu_custom_call.1} parent=1 // pred_check
      _
    $region23: #{tpu_custom_call.1} parent=1 // pred_check_branch
      %132 = sbr.rel (0) target = $region25
    $region24: #{tpu_custom_call.1} parent=1 // pred_region
      %s134 = ssub.s32 256, 256
      %135 = vsyncadd [#allocation4], %s134
      %s136 = sshll.u32 [#allocation7], 4
      %s137 = int_to_ptr.vmem [resolvable:$true] %s136
      %142 = dma.vmem_to_hbm [thread:$0]  %s137, 256, %s3, [#allocation4], 128, 128, 8
    $region25: #{tpu_custom_call.1} parent=1 // pred_fallthru
      _
    // Predicated region
    $region26: #{tpu_custom_call.1} parent=1 // pred_check
      _
    $region27: #{tpu_custom_call.1} parent=1 // pred_check_branch
      %144 = sbr.rel (0) target = $region29
    $region28: #{tpu_custom_call.1} parent=1 // pred_region
      %145 = dma.done [#allocation4], 256
    $region29: #{tpu_custom_call.1} parent=1 // pred_fallthru
      _
    %146 = vsyncpa [#allocation3], 1
    %147 = vsyncpa [#allocation6], 1
    %148 = vsyncpa [#allocation4], 1

</llo_original>
